<compile_context>
chip_gen: v7x
topology: tpu7x:2x2x1
jax: 0.10.0
libtpu: 0.0.40
codegen_flags: <defaults>
</compile_context>

<pallas_src>
import jax
import jax.numpy as jnp
from jax.experimental import pallas as pl
from jax.experimental.pallas import tpu as pltpu


def _round_up(a, b):
    return (a + b - 1) // b * b


# ----------------------------------------------------------------------------
# Kernel: one row-tile of the fused linear  o = x @ W + b
#   x_ref: [TM, G*F]   w_ref: [G*F, G*E]   b_ref: [1, G*E]   o_ref: [TM, G*E]
# ----------------------------------------------------------------------------
def fused_linear_kernel(x_ref, w_ref, b_ref, o_ref):
    acc = jnp.dot(x_ref[...], w_ref[...], preferred_element_type=jnp.float32)
    o_ref[...] = (acc + b_ref[...].astype(jnp.float32)).astype(o_ref.dtype)


# ----------------------------------------------------------------------------
# One-time parameter preparation (hoisted out of the per-call forward).
# ----------------------------------------------------------------------------
def prepare_encoder_params(w1, b1, w2, b2, *, max_gf=512, max_flops_per_byte=128.0):
    """Fuse the two Linears and (optionally) build the lane-packed weight.

    w1: [F, H], b1: [H], w2: [H, E], b2: [E]   (weights stored as [in, out]).
    Returns a dict consumed by encoder_without_lstm().
    """
    F = w1.shape[0]
    E = w2.shape[1]

    # Algebraic fusion, accumulated in f32 regardless of parameter dtype.
    w_fused = jnp.dot(w1, w2, preferred_element_type=jnp.float32)            # [F, E]
    b_fused = jnp.dot(b1, w2, preferred_element_type=jnp.float32) + b2.astype(jnp.float32)

    # Lane-dense row-group packing: G rows per kernel row so G*E == 128.
    # Guarded: the block-diagonal weight multiplies MXU work by G, so only
    # pack while the kernel is still clearly HBM-streaming-bound.
    G = 1
    if E < 128 and 128 % E == 0:
        g = 128 // E
        flops_per_byte = (2.0 * g * F * E) / (4.0 * (F + E))   # per streamed row
        if g * F <= max_gf and flops_per_byte <= max_flops_per_byte:
            G = g

    if G > 1:
        # Block-diagonal [G*F, G*E]: packed row (x_0 | ... | x_{G-1}) times this
        # gives (x_0 W | ... | x_{G-1} W).
        w_k = jnp.kron(jnp.eye(G, dtype=w_fused.dtype), w_fused)
        b_k = jnp.tile(b_fused, G)
    else:
        w_k, b_k = w_fused, b_fused

    return {
        "w": w_k,                               # [G*F, G*E] f32
        "b": b_k.reshape(1, G * E),             # [1, G*E]  f32
        "G": G,
        "F": F,
        "E": E,
    }


# ----------------------------------------------------------------------------
# Forward pass: [B, S, F] -> [B, S, E], matching Encoder_withoutLSTM.forward.
# ----------------------------------------------------------------------------
def encoder_without_lstm(
    x,
    params,
    *,
    vmem_tile_budget_bytes=24 << 20,   # total double-buffered streaming tiles
    stream_dtype=None,                 # e.g. jnp.bfloat16 on v6e/v7x (HBM-bound)
    out_dtype=None,
):
    B, S, F = x.shape
    assert F == params["F"], "feature dim mismatch with prepared params"
    E, G = params["E"], params["G"]
    w_k, b_k = params["w"], params["b"]
    GF, GE = G * F, G * E

    out_dtype = out_dtype if out_dtype is not None else x.dtype
    x_dt = stream_dtype if stream_dtype is not None else x.dtype
    w_dt = stream_dtype if stream_dtype is not None else w_k.dtype

    # ---- pack rows: pad only to sublane alignment of the packed-row axis ----
    # (at most 8*G - 1 extra rows; no round-up-to-TM padding, no big copy when
    #  M is already a multiple of 8*G)
    M = B * S
    Mg = _round_up(max(-(-M // G), 8), 8)        # packed rows, multiple of 8
    pad_rows = Mg * G - M

    x2d = x.reshape(M, F)
    if pad_rows:
        x2d = jnp.pad(x2d, ((0, pad_rows), (0, 0)))
    xg = x2d.reshape(Mg, GF).astype(x_dt)        # row-major view (no transpose)

    wk = w_k.astype(w_dt)
    bk = b_k.astype(w_dt)

    # ---- row-tile size from a VMEM budget (lane-padded, double-buffered) ----
    bytes_per_row = (
        jnp.dtype(x_dt).itemsize * max(GF, 128)
        + jnp.dtype(out_dtype).itemsize * max(GE, 128)
    )
    tm_cap = max(8, (vmem_tile_budget_bytes // (2 * bytes_per_row)) // 8 * 8)
    n_steps = pl.cdiv(Mg, tm_cap)
    if Mg // 8 >= 2:
        n_steps = max(n_steps, 2)                # >=2 steps -> both v7x TCs get work
    TM = min(tm_cap, _round_up(pl.cdiv(Mg, n_steps), 8))
    grid_m = pl.cdiv(Mg, TM)                     # ragged last block is masked by Pallas

    flops = 2 * Mg * GF * GE
    bytes_accessed = (
        Mg * GF * jnp.dtype(x_dt).itemsize
        + Mg * GE * jnp.dtype(out_dtype).itemsize
        + wk.size * jnp.dtype(w_dt).itemsize
        + bk.size * jnp.dtype(w_dt).itemsize
    )

    out = pl.pallas_call(
        fused_linear_kernel,
        out_shape=jax.ShapeDtypeStruct((Mg, GE), out_dtype),
        grid=(grid_m,),
        in_specs=[
            pl.BlockSpec((TM, GF), lambda i: (i, 0)),   # x tile (pipelined)
            pl.BlockSpec((GF, GE), lambda i: (0, 0)),   # fused weight, VMEM-resident
            pl.BlockSpec((1, GE), lambda i: (0, 0)),    # bias, VMEM-resident
        ],
        out_specs=pl.BlockSpec((TM, GE), lambda i: (i, 0)),
        compiler_params=pltpu.CompilerParams(
            dimension_semantics=("parallel",),
            vmem_limit_bytes=32 << 20,   # raises v5e's 16 MiB default; safe on v7x
        ),
        cost_estimate=pl.CostEstimate(
            flops=flops, transcendentals=0, bytes_accessed=bytes_accessed
        ),
    )(xg, wk, bk)

    # Unpack: [Mg, G*E] -> [Mg*G, E] is a free row-major view; drop padding.
    return out.reshape(Mg * G, E)[:M].reshape(B, S, E)


# ----------------------------------------------------------------------------
# Deterministic synthetic parameters matching the module's shapes.
#   PyTorch: encoder_L1: Linear(n_features, hidden) ; encoder_L2: Linear(hidden, emb)
#   Weights are stored pre-transposed ([in, out]) for the kernel.
# ----------------------------------------------------------------------------
def init_params(key, n_features, embedding_dim):
    hidden_dim = 2 * embedding_dim
    k1, k2, k3, k4 = jax.random.split(key, 4)
    w1 = jax.random.normal(k1, (n_features, hidden_dim), jnp.float32) * 0.1
    b1 = jax.random.normal(k2, (hidden_dim,), jnp.float32) * 0.1
    w2 = jax.random.normal(k3, (hidden_dim, embedding_dim), jnp.float32) * 0.1
    b2 = jax.random.normal(k4, (embedding_dim,), jnp.float32) * 0.1
    return w1, b1, w2, b2


if __name__ == "__main__":
    # Small shapes consistent with the module's forward.
    batch, seq_len, n_features, embedding_dim = 2, 8, 4, 32

    key = jax.random.PRNGKey(0)
    kx, kp = jax.random.split(key)
    x = jax.random.normal(kx, (batch, seq_len, n_features), jnp.float32)
    w1, b1, w2, b2 = init_params(kp, n_features, embedding_dim)

    # One-time parameter preparation (fusion + lane packing), then forward.
    params = prepare_encoder_params(w1, b1, w2, b2)
    y = encoder_without_lstm(x, params)
    y = jax.block_until_ready(y)

    # Cross-check against plain JAX reference of the same math (no ReLU,
    # matching the PyTorch forward()).
    ref = (x @ w1 + b1) @ w2 + b2
    assert y.shape == (batch, seq_len, embedding_dim)
    assert jnp.allclose(y, ref, atol=1e-4, rtol=1e-4), float(
        jnp.max(jnp.abs(y - ref))
    )

    print("KERNEL_OK")
</pallas_src>

<mosaic_0001>
module attributes {stable_mosaic.version = 11 : i64} {
  func.func @fused_linear_kernel(%arg0: i32, %arg1: memref<8x16xf32, #tpu.memory_space<vmem>>, %arg2: memref<16x128xf32, #tpu.memory_space<vmem>>, %arg3: memref<1x128xf32, #tpu.memory_space<vmem>>, %arg4: memref<8x128xf32, #tpu.memory_space<vmem>>) attributes {dimension_semantics = [#tpu.dimension_semantics<parallel>], iteration_bounds = array<i64: 1>, scalar_prefetch = 0 : i64, scratch_operands = 0 : i64, tpu.core_type = #tpu.core_type<tc>, window_params = [{transform_indices = @transform_0, window_bounds = array<i64: 8, 16>}, {pipeline_mode = #tpu.pipeline_mode<synchronous>, transform_indices = @transform_1, window_bounds = array<i64: 16, 128>}, {pipeline_mode = #tpu.pipeline_mode<synchronous>, transform_indices = @transform_2, window_bounds = array<i64: 1, 128>}, {transform_indices = @transform_3, window_bounds = array<i64: 8, 128>}]} {
    %c0 = arith.constant 0 : index
    %c0_0 = arith.constant 0 : index
    %0 = vector.load %arg1[%c0, %c0_0] : memref<8x16xf32, #tpu.memory_space<vmem>>, vector<8x16xf32>
    %c0_1 = arith.constant 0 : index
    %c0_2 = arith.constant 0 : index
    %1 = vector.load %arg2[%c0_1, %c0_2] : memref<16x128xf32, #tpu.memory_space<vmem>>, vector<16x128xf32>
    %cst = arith.constant dense<0.000000e+00> : vector<8x128xf32>
    %2 = tpu.matmul %0, %1, %cst {dimension_numbers = #tpu.dot_dimension_numbers<[1], [0], [0], [1], [0, 0, 1, 1], [], []>} : vector<8x16xf32>, vector<16x128xf32>, vector<8x128xf32> -> vector<8x128xf32>
    %c0_3 = arith.constant 0 : index
    %c0_4 = arith.constant 0 : index
    %3 = vector.load %arg3[%c0_3, %c0_4] : memref<1x128xf32, #tpu.memory_space<vmem>>, vector<1x128xf32>
    %4 = vector.broadcast %3 : vector<1x128xf32> to vector<8x128xf32>
    %5 = arith.addf %2, %4 : vector<8x128xf32>
    %c0_5 = arith.constant 0 : index
    %c0_6 = arith.constant 0 : index
    %6 = vector.load %arg4[%c0_5, %c0_6] : memref<8x128xf32, #tpu.memory_space<vmem>>, vector<8x128xf32>
    tpu.vector_store %arg4[%c0_5, %c0_6], %5 {strides = array<i32>} : memref<8x128xf32, #tpu.memory_space<vmem>>, vector<8x128xf32>,
    return
  }
  func.func @transform_0(%arg0: i32) -> (i32, i32) {
    %c0_i32 = arith.constant 0 : i32
    %c0_i32_0 = arith.constant 0 : i32
    return %arg0, %c0_i32 : i32, i32
  }
  func.func @transform_1(%arg0: i32) -> (i32, i32) {
    %c0_i32 = arith.constant 0 : i32
    %c0_i32_0 = arith.constant 0 : i32
    %c0_i32_1 = arith.constant 0 : i32
    return %c0_i32, %c0_i32_0 : i32, i32
  }
  func.func @transform_2(%arg0: i32) -> (i32, i32) {
    %c0_i32 = arith.constant 0 : i32
    %c0_i32_0 = arith.constant 0 : i32
    %c0_i32_1 = arith.constant 0 : i32
    return %c0_i32, %c0_i32_0 : i32, i32
  }
  func.func @transform_3(%arg0: i32) -> (i32, i32) {
    %c0_i32 = arith.constant 0 : i32
    %c0_i32_0 = arith.constant 0 : i32
    return %arg0, %c0_i32 : i32, i32
  }
}

</mosaic_0001>

<llo_original>
// kernel: tpu_custom_call.1
$region0: #{tpu_custom_call.1}
  #allocation0 [shape = 'u32[]', space=smem, size = 0x4, offset = 0x4, fixed_abs, tag = 'smem constant byte address 0x4 - core index']
  #allocation1 [shape = 'u32[144,128]{1,0:T(1,128)}', space=vmem, size = 0x12000, scoped, tag = 'internal scratch']
  %s0 = inlined_call_operand.hbm [shape: f32[8,16], index: 0, kind: input, shape index: {}]
  %s1 = inlined_call_operand.hbm [shape: f32[16,128], index: 1, kind: input, shape index: {}]
  %s2 = inlined_call_operand.vmem [shape: f32[1,128], index: 2, kind: input, shape index: {}]
  %s3 = inlined_call_operand.hbm [shape: f32[8,128], index: 3, kind: output, shape index: {}]
  %s4 = sld [smem:[#allocation0]]
  $region30: #{tpu_custom_call.1} parent=0
    _
  %s6 = ssub.s32 1, %s4
  %s7 = scalar_select 0, %s6, %s4
  $region1: #{tpu_custom_call.1} parent=0
    #allocation2 [shape = 'u8[4096]{0}', space=vmem, size = 0x1000, scoped, tag = 'input window, operand 0, single buffered']
    #allocation3 [shape = 's32[1]{0}', space=sflag, size = 0x4, scoped, tag = 'scoped memory for tpu_custom_call.1']
    #allocation4 [shape = 's32[1]{0}', space=sflag, size = 0x4, scoped, tag = 'scoped memory for tpu_custom_call.1']
    #allocation5 [shape = 'u8[8192]{0}', space=vmem, size = 0x2000, scoped, tag = 'input window, operand 1, single buffered']
    #allocation6 [shape = 's32[1]{0}', space=sflag, size = 0x4, scoped, tag = 'scoped memory for tpu_custom_call.1']
    #allocation7 [shape = 'u8[4096]{0}', space=vmem, size = 0x1000, scoped, tag = 'output window, operand 0, single buffered']
    %8 = vsyncpa [#allocation3], 0
    %9 = vsyncpa [#allocation6], 0
    %10 = vsyncpa [#allocation4], 0
    // Predicated region
    $region2: #{tpu_custom_call.1} parent=1 // pred_check
      _
    $region3: #{tpu_custom_call.1} parent=1 // pred_check_branch
      %12 = sbr.rel (0) target = $region5
    $region4: #{tpu_custom_call.1} parent=1 // pred_region
      %s14 = ssub.s32 128, 128
      %15 = vsyncadd [#allocation3], %s14
      %s17 = sshll.u32 [#allocation2], 4
      %s18 = int_to_ptr.vmem [resolvable:$true] %s17
      %20 = dma.hbm_to_vmem [thread:$0]  %s0, 128, %s18, [#allocation3]
    $region5: #{tpu_custom_call.1} parent=1 // pred_fallthru
      _
    // Predicated region
    $region6: #{tpu_custom_call.1} parent=1 // pred_check
      _
    $region7: #{tpu_custom_call.1} parent=1 // pred_check_branch
      %22 = sbr.rel (0) target = $region9
    $region8: #{tpu_custom_call.1} parent=1 // pred_region
      %s24 = ssub.s32 256, 256
      %25 = vsyncadd [#allocation6], %s24
      %s26 = sshll.u32 [#allocation5], 4
      %s27 = int_to_ptr.vmem [resolvable:$true] %s26
      %32 = dma.hbm_to_vmem [thread:$0]  %s1, 256, %s27, [#allocation6], 128, 128, 8
    $region9: #{tpu_custom_call.1} parent=1 // pred_fallthru
      _
    // Predicated region
    $region10: #{tpu_custom_call.1} parent=1 // pred_check
      _
    $region11: #{tpu_custom_call.1} parent=1 // pred_check_branch
      %34 = sbr.rel (0) target = $region13
    $region12: #{tpu_custom_call.1} parent=1 // pred_region
      _
    $region13: #{tpu_custom_call.1} parent=1 // pred_fallthru
      _
    // Predicated region
    $region14: #{tpu_custom_call.1} parent=1 // pred_check
      _
    $region15: #{tpu_custom_call.1} parent=1 // pred_check_branch
      %36 = sbr.rel (0) target = $region17
    $region16: #{tpu_custom_call.1} parent=1 // pred_region
      %37 = dma.done [#allocation3], 128
    $region17: #{tpu_custom_call.1} parent=1 // pred_fallthru
      _
    // Predicated region
    $region18: #{tpu_custom_call.1} parent=1 // pred_check
      _
    $region19: #{tpu_custom_call.1} parent=1 // pred_check_branch
      %39 = sbr.rel (0) target = $region21
    $region20: #{tpu_custom_call.1} parent=1 // pred_region
      %40 = dma.done [#allocation6], 256
    $region21: #{tpu_custom_call.1} parent=1 // pred_fallthru
      _
    %v41 = vld [vmem:[#allocation2] sm:$0xff]
    %v42 = vld [vmem:[#allocation5] sm:$0xff]
    %v43 = vld [vmem:[#allocation5 + $0x8] sm:$0xff]
    %v44 = vld [vmem:[%s2] sm:$0x1]
    %v46 = vlaneseq
    %v47 = vshrl.u32 %v46, 7
    %v48 = vsub.s32 0, %v47
    %v49 = vrot.slane %v44, %v48
    %vm51 = vcmask 130048
    %v53 = vsel %vm51, %v41, 0
    %55 = vmatprep.subr.mxu0 0.0
    %56 = vmatpush1.msra.mxu0 %v42
    %57 = vmatprep.subr.mxu0 0.0
    %58 = vmatpush1.msra.mxu0 %v43
    %59 = vmatprep.subr.mxu0 0.0
    %60 = vmatpush1.msra.mxu0 0.0
    %61 = vmatprep.subr.mxu0 0.0
    %62 = vmatpush1.msra.mxu0 0.0
    %63 = vmatprep.subr.mxu0 0.0
    %64 = vmatpush1.msra.mxu0 0.0
    %65 = vmatprep.subr.mxu0 0.0
    %66 = vmatpush1.msra.mxu0 0.0
    %67 = vmatprep.subr.mxu0 0.0
    %68 = vmatpush1.msra.mxu0 0.0
    %69 = vmatprep.subr.mxu0 0.0
    %70 = vmatpush1.msra.mxu0 0.0
    %71 = vmatprep.subr.mxu0 0.0
    %72 = vmatpush1.msra.mxu0 0.0
    %73 = vmatprep.subr.mxu0 0.0
    %74 = vmatpush1.msra.mxu0 0.0
    %75 = vmatprep.subr.mxu0 0.0
    %76 = vmatpush1.msra.mxu0 0.0
    %77 = vmatprep.subr.mxu0 0.0
    %78 = vmatpush1.msra.mxu0 0.0
    %79 = vmatprep.subr.mxu0 0.0
    %80 = vmatpush1.msra.mxu0 0.0
    %81 = vmatprep.subr.mxu0 0.0
    %82 = vmatpush1.msra.mxu0 0.0
    %83 = vmatprep.subr.mxu0 0.0
    %84 = vmatpush1.msra.mxu0 0.0
    %85 = vmatprep.subr.mxu0 0.0
    %86 = vmatpush1.msra.mxu0 0.0
    %87 = vmatprep.subr.mxu0 0.0
    %88 = vmatpush1.msra.mxu0 0.0
    %89 = vmatprep.subr.mxu0 0.0
    %90 = vmatpush1.msra.mxu0 0.0
    %91 = vmatprep.subr.mxu0 0.0
    %92 = vmatpush1.msra.mxu0 0.0
    %93 = vmatprep.subr.mxu0 0.0
    %94 = vmatpush1.msra.mxu0 0.0
    %95 = vmatprep.subr.mxu0 0.0
    %96 = vmatpush1.msra.mxu0 0.0
    %97 = vmatprep.subr.mxu0 0.0
    %98 = vmatpush1.msra.mxu0 0.0
    %99 = vmatprep.subr.mxu0 0.0
    %100 = vmatpush1.msra.mxu0 0.0
    %101 = vmatprep.subr.mxu0 0.0
    %102 = vmatpush1.msra.mxu0 0.0
    %103 = vmatprep.subr.mxu0 0.0
    %104 = vmatpush1.msra.mxu0 0.0
    %105 = vmatprep.subr.mxu0 0.0
    %106 = vmatpush1.msra.mxu0 0.0
    %107 = vmatprep.subr.mxu0 0.0
    %108 = vmatpush1.msra.mxu0 0.0
    %109 = vmatprep.subr.mxu0 0.0
    %110 = vmatpush1.msra.mxu0 0.0
    %111 = vmatprep.subr.mxu0 0.0
    %112 = vmatpush1.msra.mxu0 0.0
    %113 = vmatprep.subr.mxu0 0.0
    %114 = vmatpush1.msra.mxu0 0.0
    %115 = vmatprep.subr.mxu0 0.0
    %116 = vmatpush1.msra.mxu0 0.0
    %117 = vmatprep.subr.mxu0 0.0
    %118 = vmatpush1.msra.mxu0 0.0
    %119 = vmatprep.mubr.f32.mxu0 0.0
    %120 = vmatmul.mubr.f32.gmra.mrb[0].mxu0 %v53
    %v121 = vpop.f32.mrb[0].mxu0
    %v122 = vadd.f32 %v49, %v121
    %v123 = vpop.f32.mrb[0].mxu0
    %124 = vdwg.mxu0
    %125 = vst [vmem:[#allocation7] sm:$0xff] %v122
    // Predicated region
    $region22: #{tpu_custom_call.1} parent=1 // pred_check
      _
    $region23: #{tpu_custom_call.1} parent=1 // pred_check_branch
      %127 = sbr.rel (0) target = $region25
    $region24: #{tpu_custom_call.1} parent=1 // pred_region
      %s129 = ssub.s32 128, 128
      %130 = vsyncadd [#allocation4], %s129
      %s132 = sshll.u32 [#allocation7], 4
      %s133 = int_to_ptr.vmem [resolvable:$true] %s132
      %135 = dma.vmem_to_hbm [thread:$0]  %s133, 128, %s3, [#allocation4]
    $region25: #{tpu_custom_call.1} parent=1 // pred_fallthru
      _
    // Predicated region
    $region26: #{tpu_custom_call.1} parent=1 // pred_check
      _
    $region27: #{tpu_custom_call.1} parent=1 // pred_check_branch
      %137 = sbr.rel (0) target = $region29
    $region28: #{tpu_custom_call.1} parent=1 // pred_region
      %138 = dma.done [#allocation4], 128
    $region29: #{tpu_custom_call.1} parent=1 // pred_fallthru
      _
    %139 = vsyncpa [#allocation3], 1
    %140 = vsyncpa [#allocation6], 1
    %141 = vsyncpa [#allocation4], 1

</llo_original>
